<compile_context>
chip_gen: v7x
topology: tpu7x:2x2x1
jax: 0.10.0
libtpu: 0.0.40
codegen_flags: <defaults>
</compile_context>

<pallas_src>
import functools

import jax
import jax.numpy as jnp
from jax.experimental import pallas as pl
from jax.experimental.pallas import tpu as pltpu

LANE = 128          # TPU lane width: last-dim padding target
NEG = -1.0e30       # "minus infinity" that stays NaN-free through exp/log math


def _round_up(n, m):
    return (n + m - 1) // m * m


def _pad2(a, rows, cols, value=0.0):
    r, c = a.shape
    return jnp.pad(a, ((0, rows - r), (0, cols - c)), constant_values=value)


def pl_hierarchy_kernel(x_ref, w1_ref, b1_ref, w2_ref, b2_ref,
                        y_ref, mask_ref, out_ref, feat_acc, *, threshold):
    """Fused backbone + fc head + pseudo-label hierarchy loss.

    Grid = (batch tiles, K tiles).  K is the reduction axis of the first
    matmul; `feat_acc` carries the f32 partial feature across K steps.  All
    post-matmul work runs only on the last K step of each batch tile.
    """
    k = pl.program_id(1)
    nk = pl.num_programs(1)

    @pl.when(k == 0)
    def _init():
        feat_acc[...] = jnp.zeros_like(feat_acc)

    # ---- backbone matmul: bf16 operands, f32 accumulation on the MXU ----
    feat_acc[...] += jnp.dot(x_ref[...], w1_ref[...],
                             preferred_element_type=jnp.float32)

    @pl.when(k == nk - 1)
    def _epilogue():
        # feature = relu(x @ W1 + b1); padded HID columns stay exactly 0.
        feature = jnp.maximum(feat_acc[...] + b1_ref[...], 0.0)

        # fc head: output = feature @ W2 + b2.  Padded class columns carry the
        # NEG bias, so they vanish from log_softmax below.
        output = (jnp.dot(feature.astype(w2_ref.dtype), w2_ref[...],
                          preferred_element_type=jnp.float32)
                  + b2_ref[...])                                  # [TB, CP]

        y = y_ref[...]                                            # [TB, CP]
        tb, cp = y.shape
        iota = jax.lax.broadcasted_iota(jnp.int32, (tb, cp), 1)

        # softmax(y): padded class logits are NEG -> exp underflows to 0.
        y_max = jnp.max(y, axis=1, keepdims=True)
        ey = jnp.exp(y - y_max)
        sum_ey = jnp.sum(ey, axis=1, keepdims=True)
        inv_sum = pl.reciprocal(sum_ey, approx=True)              # EUP slot
        y_probs = ey * inv_sum

        # argmax one-hot straight from the raw logits:
        # argmax(softmax(y)) == argmax(y); first index wins ties (torch-like).
        is_max = y >= y_max
        first_idx = jnp.min(jnp.where(is_max, iota, cp), axis=1, keepdims=True)
        onehot = (iota == first_idx).astype(jnp.float32)

        # gt_mask = (max prob > th) = (1/sum_ey > th) = (th * sum_ey < 1):
        # division-free and exact, independent of the approx reciprocal.
        gt_mask = (sum_ey * threshold < 1.0).astype(jnp.float32)  # [TB, 1]
        lt_mask = 1.0 - gt_mask
        p_target = gt_mask * 10.0 * onehot + lt_mask * y_probs    # [TB, CP]

        # log_softmax(output); padded logits ~ NEG -> contribute 0 to log_z
        # and are multiplied by p_target == 0.
        o_max = jnp.max(output, axis=1, keepdims=True)
        eo = jnp.exp(output - o_max)
        log_z = jnp.log(jnp.sum(eo, axis=1, keepdims=True)) + o_max
        log_p = output - log_z

        # per-example masked loss, lane-broadcast so the store is lane-dense.
        per_example = -jnp.sum(p_target * log_p, axis=1, keepdims=True)
        masked = per_example * mask_ref[...]                      # [TB, 1]
        out_ref[...] = jnp.broadcast_to(masked, out_ref.shape)


def pl_hierarchy_loss(x, y, mask, w1, b1, w2, b2, threshold,
                      *, tile_b=128, tile_k=512):
    B = x.shape[0]
    x_flat = x.reshape(B, -1)
    D = x_flat.shape[1]
    hid = w1.shape[1]
    ncls = y.shape[1]

    tb = min(tile_b, _round_up(B, 16))   # multiple of 16 for bf16 sublane pack
    b_pad = _round_up(B, tb)
    tk = min(tile_k, _round_up(D, LANE))
    d_pad = _round_up(D, tk)
    hid_p = _round_up(hid, LANE)
    c_p = _round_up(ncls, LANE)
    nb, nk = b_pad // tb, d_pad // tk

    # Lane-dense padded operands; bf16 only for the MXU operands.
    x_p = _pad2(x_flat.astype(jnp.float32), b_pad, d_pad).astype(jnp.bfloat16)
    w1_p = _pad2(w1.astype(jnp.float32), d_pad, hid_p).astype(jnp.bfloat16)
    b1_p = _pad2(b1.reshape(1, -1).astype(jnp.float32), 1, hid_p)
    w2_p = _pad2(w2.astype(jnp.float32), hid_p, c_p).astype(jnp.bfloat16)
    b2_p = _pad2(b2.reshape(1, -1).astype(jnp.float32), 1, c_p, value=NEG)
    y_p = _pad2(y.astype(jnp.float32), b_pad, c_p, value=NEG)
    m_p = _pad2(mask.reshape(B, 1).astype(jnp.float32), b_pad, 1)

    kernel = functools.partial(pl_hierarchy_kernel, threshold=float(threshold))

    cost = pl.CostEstimate(
        flops=2 * b_pad * d_pad * hid_p + 2 * b_pad * hid_p * c_p,
        transcendentals=3 * b_pad * c_p,
        bytes_accessed=(x_p.size * 2 + nb * w1_p.size * 2 + w2_p.size * 2
                        + 4 * (b1_p.size + b2_p.size + y_p.size + m_p.size)
                        + 4 * b_pad * LANE),
    )

    out = pl.pallas_call(
        kernel,
        out_shape=jax.ShapeDtypeStruct((b_pad, LANE), jnp.float32),
        grid_spec=pltpu.PrefetchScalarGridSpec(
            num_scalar_prefetch=0,
            grid=(nb, nk),
            in_specs=[
                pl.BlockSpec((tb, tk), lambda i, k: (i, k)),      # x (bf16)
                pl.BlockSpec((tk, hid_p), lambda i, k: (k, 0)),   # w1 (bf16)
                pl.BlockSpec((1, hid_p), lambda i, k: (0, 0)),    # b1 (f32)
                pl.BlockSpec((hid_p, c_p), lambda i, k: (0, 0)),  # w2 (bf16)
                pl.BlockSpec((1, c_p), lambda i, k: (0, 0)),      # b2 (f32)
                pl.BlockSpec((tb, c_p), lambda i, k: (i, 0)),     # y (f32)
                pl.BlockSpec((tb, 1), lambda i, k: (i, 0)),       # mask (f32)
            ],
            out_specs=pl.BlockSpec((tb, LANE), lambda i, k: (i, 0)),
            scratch_shapes=[pltpu.VMEM((tb, hid_p), jnp.float32)],
        ),
        compiler_params=pltpu.CompilerParams(
            dimension_semantics=("parallel", "arbitrary"),
            vmem_limit_bytes=64 * 1024 * 1024,
        ),
        cost_estimate=cost,
    )(x_p, w1_p, b1_p, w2_p, b2_p, y_p, m_p)

    # Each row's lane 0 holds that example's masked loss (0 for padded rows).
    return jnp.sum(out[:, 0]) / B


def _reference_loss(x, y, mask, w1, b1, w2, b2, threshold):
    """Pure-JAX reference with the same bf16-matmul / f32-accumulate recipe."""
    B = x.shape[0]
    xf = x.reshape(B, -1)
    feature = jnp.maximum(
        jnp.dot(xf.astype(jnp.bfloat16), w1.astype(jnp.bfloat16),
                preferred_element_type=jnp.float32) + b1, 0.0)
    output = jnp.dot(feature.astype(jnp.bfloat16), w2.astype(jnp.bfloat16),
                     preferred_element_type=jnp.float32) + b2
    y_probs = jax.nn.softmax(y, axis=1)
    onehot = jax.nn.one_hot(jnp.argmax(y_probs, axis=1), y.shape[1],
                            dtype=jnp.float32)
    gt = jnp.max((y_probs > threshold).astype(jnp.float32), axis=1)
    lt = 1.0 - gt
    p_target = gt[:, None] * 10.0 * onehot + lt[:, None] * y_probs
    log_p = jax.nn.log_softmax(output, axis=1)
    return jnp.mean(-jnp.sum(p_target * log_p, axis=1) * mask)


if __name__ == "__main__":
    B, Cin, H, W = 8, 4, 16, 16
    HID, NCLS = 32, 10
    THRESHOLD = 0.5

    key = jax.random.PRNGKey(0)
    kx, ky, kw1, kb1, kw2, kb2, km = jax.random.split(key, 7)

    x = jax.random.normal(kx, (B, Cin, H, W), dtype=jnp.float32)
    y = jax.random.normal(ky, (B, NCLS), dtype=jnp.float32) * 3.0
    mask = (jax.random.uniform(km, (B,)) < 0.7).astype(jnp.float32)

    D = Cin * H * W
    w1 = jax.random.normal(kw1, (D, HID), dtype=jnp.float32) * 0.05
    b1 = jax.random.normal(kb1, (1, HID), dtype=jnp.float32) * 0.01
    w2 = jax.random.normal(kw2, (HID, NCLS), dtype=jnp.float32) * 0.1
    b2 = jax.random.normal(kb2, (1, NCLS), dtype=jnp.float32) * 0.01

    loss = pl_hierarchy_loss(x, y, mask, w1, b1, w2, b2, THRESHOLD)
    jax.block_until_ready(loss)

    ref = _reference_loss(x, y, mask, w1, b1, w2, b2, THRESHOLD)
    # bf16 matmul operands + EUP approx reciprocal => small numeric drift.
    assert jnp.allclose(loss, ref, rtol=2e-2, atol=2e-2), (loss, ref)

    print("KERNEL_OK")
</pallas_src>

<mosaic_0001>
module attributes {stable_mosaic.version = 11 : i64} {
  func.func @pl_hierarchy_kernel(%arg0: i32, %arg1: i32, %arg2: memref<16x512xbf16, #tpu.memory_space<vmem>>, %arg3: memref<512x128xbf16, #tpu.memory_space<vmem>>, %arg4: memref<1x128xf32, #tpu.memory_space<vmem>>, %arg5: memref<128x128xbf16, #tpu.memory_space<vmem>>, %arg6: memref<1x128xf32, #tpu.memory_space<vmem>>, %arg7: memref<16x128xf32, #tpu.memory_space<vmem>>, %arg8: memref<16x1xf32, #tpu.memory_space<vmem>>, %arg9: memref<16x128xf32, #tpu.memory_space<vmem>>, %arg10: memref<16x128xf32, #tpu.memory_space<vmem>>) attributes {dimension_semantics = [#tpu.dimension_semantics<parallel>, #tpu.dimension_semantics<arbitrary>], iteration_bounds = array<i64: 1, 2>, scalar_prefetch = 0 : i64, scratch_operands = 1 : i64, tpu.core_type = #tpu.core_type<tc>, window_params = [{transform_indices = @transform_0, window_bounds = array<i64: 16, 512>}, {transform_indices = @transform_1, window_bounds = array<i64: 512, 128>}, {pipeline_mode = #tpu.pipeline_mode<synchronous>, transform_indices = @transform_2, window_bounds = array<i64: 1, 128>}, {pipeline_mode = #tpu.pipeline_mode<synchronous>, transform_indices = @transform_3, window_bounds = array<i64: 128, 128>}, {pipeline_mode = #tpu.pipeline_mode<synchronous>, transform_indices = @transform_4, window_bounds = array<i64: 1, 128>}, {transform_indices = @transform_5, window_bounds = array<i64: 16, 128>}, {transform_indices = @transform_6, window_bounds = array<i64: 16, 1>}, {transform_indices = @transform_7, window_bounds = array<i64: 16, 128>}]} {
    %c0_i32 = arith.constant 0 : i32
    %0 = arith.cmpi eq, %arg1, %c0_i32 : i32
    %1 = arith.extui %0 : i1 to i32
    %c0_i32_0 = arith.constant 0 : i32
    %2 = arith.cmpi ne, %1, %c0_i32_0 : i32
    scf.if %2 {
      %cst_9 = arith.constant 0.000000e+00 : f32
      %12 = vector.broadcast %cst_9 : f32 to vector<16x128xf32>
      %c0_10 = arith.constant 0 : index
      %c0_11 = arith.constant 0 : index
      %13 = vector.load %arg10[%c0_10, %c0_11] : memref<16x128xf32, #tpu.memory_space<vmem>>, vector<16x128xf32>
      tpu.vector_store %arg10[%c0_10, %c0_11], %12 {strides = array<i32>} : memref<16x128xf32, #tpu.memory_space<vmem>>, vector<16x128xf32>,
    } else {
    }
    %c0 = arith.constant 0 : index
    %c0_1 = arith.constant 0 : index
    %3 = vector.load %arg10[%c0, %c0_1] : memref<16x128xf32, #tpu.memory_space<vmem>>, vector<16x128xf32>
    %c0_2 = arith.constant 0 : index
    %c0_3 = arith.constant 0 : index
    %4 = vector.load %arg2[%c0_2, %c0_3] : memref<16x512xbf16, #tpu.memory_space<vmem>>, vector<16x512xbf16>
    %c0_4 = arith.constant 0 : index
    %c0_5 = arith.constant 0 : index
    %5 = vector.load %arg3[%c0_4, %c0_5] : memref<512x128xbf16, #tpu.memory_space<vmem>>, vector<512x128xbf16>
    %cst = arith.constant dense<0.000000e+00> : vector<16x128xf32>
    %6 = tpu.matmul %4, %5, %cst {dimension_numbers = #tpu.dot_dimension_numbers<[1], [0], [0], [1], [0, 0, 1, 1], [], []>} : vector<16x512xbf16>, vector<512x128xbf16>, vector<16x128xf32> -> vector<16x128xf32>
    %7 = arith.addf %3, %6 : vector<16x128xf32>
    %c0_6 = arith.constant 0 : index
    %c0_7 = arith.constant 0 : index
    %8 = vector.load %arg10[%c0_6, %c0_7] : memref<16x128xf32, #tpu.memory_space<vmem>>, vector<16x128xf32>
    tpu.vector_store %arg10[%c0_6, %c0_7], %7 {strides = array<i32>} : memref<16x128xf32, #tpu.memory_space<vmem>>, vector<16x128xf32>,
    %c1_i32 = arith.constant 1 : i32
    %9 = arith.cmpi eq, %arg1, %c1_i32 : i32
    %10 = arith.extui %9 : i1 to i32
    %c0_i32_8 = arith.constant 0 : i32
    %11 = arith.cmpi ne, %10, %c0_i32_8 : i32
    scf.if %11 {
      %c0_9 = arith.constant 0 : index
      %c0_10 = arith.constant 0 : index
      %12 = vector.load %arg10[%c0_9, %c0_10] : memref<16x128xf32, #tpu.memory_space<vmem>>, vector<16x128xf32>
      %c0_11 = arith.constant 0 : index
      %c0_12 = arith.constant 0 : index
      %13 = vector.load %arg4[%c0_11, %c0_12] : memref<1x128xf32, #tpu.memory_space<vmem>>, vector<1x128xf32>
      %14 = vector.broadcast %13 : vector<1x128xf32> to vector<16x128xf32>
      %15 = arith.addf %12, %14 : vector<16x128xf32>
      %cst_13 = arith.constant 0.000000e+00 : f32
      %16 = vector.broadcast %cst_13 : f32 to vector<16x128xf32>
      %17 = arith.maximumf %15, %16 : vector<16x128xf32>
      %18 = arith.truncf %17 : vector<16x128xf32> to vector<16x128xbf16>
      %c0_14 = arith.constant 0 : index
      %c0_15 = arith.constant 0 : index
      %19 = vector.load %arg5[%c0_14, %c0_15] : memref<128x128xbf16, #tpu.memory_space<vmem>>, vector<128x128xbf16>
      %cst_16 = arith.constant dense<0.000000e+00> : vector<16x128xf32>
      %20 = tpu.matmul %18, %19, %cst_16 {dimension_numbers = #tpu.dot_dimension_numbers<[1], [0], [0], [1], [0, 0, 1, 1], [], []>} : vector<16x128xbf16>, vector<128x128xbf16>, vector<16x128xf32> -> vector<16x128xf32>
      %c0_17 = arith.constant 0 : index
      %c0_18 = arith.constant 0 : index
      %21 = vector.load %arg6[%c0_17, %c0_18] : memref<1x128xf32, #tpu.memory_space<vmem>>, vector<1x128xf32>
      %22 = vector.broadcast %21 : vector<1x128xf32> to vector<16x128xf32>
      %23 = arith.addf %20, %22 : vector<16x128xf32>
      %c0_19 = arith.constant 0 : index
      %c0_20 = arith.constant 0 : index
      %24 = vector.load %arg7[%c0_19, %c0_20] : memref<16x128xf32, #tpu.memory_space<vmem>>, vector<16x128xf32>
      %25 = tpu.iota {dimensions = array<i32: 1>} : vector<16x128xi32>
      %cst_21 = arith.constant dense<0xFF800000> : vector<16xf32>
      %26 = vector.multi_reduction <maximumf>, %24, %cst_21 [1] : vector<16x128xf32> to vector<16xf32>
      %27 = vector.shape_cast %26 : vector<16xf32> to vector<16x1xf32>
      %28 = vector.broadcast %27 : vector<16x1xf32> to vector<16x128xf32>
      %29 = arith.subf %24, %28 : vector<16x128xf32>
      %30 = math.exp %29 : vector<16x128xf32>
      %cst_22 = arith.constant dense<0.000000e+00> : vector<16xf32>
      %31 = vector.multi_reduction <add>, %30, %cst_22 [1] : vector<16x128xf32> to vector<16xf32>
      %32 = vector.shape_cast %31 : vector<16xf32> to vector<16x1xf32>
      %33 = tpu.reciprocal %32 {approx = true} : vector<16x1xf32> -> vector<16x1xf32>
      %34 = vector.broadcast %33 : vector<16x1xf32> to vector<16x128xf32>
      %35 = arith.mulf %30, %34 : vector<16x128xf32>
      %36 = vector.broadcast %27 : vector<16x1xf32> to vector<16x128xf32>
      %37 = arith.cmpf oge, %24, %36 : vector<16x128xf32>
      %c128_i32 = arith.constant 128 : i32
      %38 = vector.broadcast %c128_i32 : i32 to vector<16x128xi32>
      %39 = arith.select %37, %25, %38 : vector<16x128xi1>, vector<16x128xi32>
      %cst_23 = arith.constant dense<2147483647> : vector<16xi32>
      %40 = vector.multi_reduction <minsi>, %39, %cst_23 [1] : vector<16x128xi32> to vector<16xi32>
      %41 = vector.shape_cast %40 : vector<16xi32> to vector<16x1xi32>
      %42 = vector.broadcast %41 : vector<16x1xi32> to vector<16x128xi32>
      %43 = arith.cmpi eq, %25, %42 : vector<16x128xi32>
      %44 = arith.extui %43 : vector<16x128xi1> to vector<16x128xi32>
      %45 = arith.sitofp %44 : vector<16x128xi32> to vector<16x128xf32>
      %cst_24 = arith.constant 5.000000e-01 : f32
      %46 = vector.broadcast %cst_24 : f32 to vector<16x1xf32>
      %47 = arith.mulf %32, %46 : vector<16x1xf32>
      %cst_25 = arith.constant 1.000000e+00 : f32
      %48 = vector.broadcast %cst_25 : f32 to vector<16x1xf32>
      %49 = arith.cmpf olt, %47, %48 : vector<16x1xf32>
      %50 = arith.extui %49 : vector<16x1xi1> to vector<16x1xi32>
      %51 = arith.sitofp %50 : vector<16x1xi32> to vector<16x1xf32>
      %cst_26 = arith.constant 1.000000e+00 : f32
      %52 = vector.broadcast %cst_26 : f32 to vector<16x1xf32>
      %53 = arith.subf %52, %51 : vector<16x1xf32>
      %cst_27 = arith.constant 1.000000e+01 : f32
      %54 = vector.broadcast %cst_27 : f32 to vector<16x1xf32>
      %55 = arith.mulf %51, %54 : vector<16x1xf32>
      %56 = vector.broadcast %55 : vector<16x1xf32> to vector<16x128xf32>
      %57 = arith.mulf %56, %45 : vector<16x128xf32>
      %58 = vector.broadcast %53 : vector<16x1xf32> to vector<16x128xf32>
      %59 = arith.mulf %58, %35 : vector<16x128xf32>
      %60 = arith.addf %57, %59 : vector<16x128xf32>
      %cst_28 = arith.constant dense<0xFF800000> : vector<16xf32>
      %61 = vector.multi_reduction <maximumf>, %23, %cst_28 [1] : vector<16x128xf32> to vector<16xf32>
      %62 = vector.shape_cast %61 : vector<16xf32> to vector<16x1xf32>
      %63 = vector.broadcast %62 : vector<16x1xf32> to vector<16x128xf32>
      %64 = arith.subf %23, %63 : vector<16x128xf32>
      %65 = math.exp %64 : vector<16x128xf32>
      %cst_29 = arith.constant dense<0.000000e+00> : vector<16xf32>
      %66 = vector.multi_reduction <add>, %65, %cst_29 [1] : vector<16x128xf32> to vector<16xf32>
      %67 = vector.shape_cast %66 : vector<16xf32> to vector<16x1xf32>
      %68 = math.log %67 : vector<16x1xf32>
      %69 = arith.addf %68, %62 : vector<16x1xf32>
      %70 = vector.broadcast %69 : vector<16x1xf32> to vector<16x128xf32>
      %71 = arith.subf %23, %70 : vector<16x128xf32>
      %72 = arith.mulf %60, %71 : vector<16x128xf32>
      %cst_30 = arith.constant dense<0.000000e+00> : vector<16xf32>
      %73 = vector.multi_reduction <add>, %72, %cst_30 [1] : vector<16x128xf32> to vector<16xf32>
      %74 = vector.shape_cast %73 : vector<16xf32> to vector<16x1xf32>
      %cst_31 = arith.constant 0.000000e+00 : f32
      %75 = vector.broadcast %cst_31 : f32 to vector<16x1xf32>
      %76 = arith.subf %75, %74 : vector<16x1xf32>
      %c0_32 = arith.constant 0 : index
      %c0_33 = arith.constant 0 : index
      %77 = vector.load %arg8[%c0_32, %c0_33] : memref<16x1xf32, #tpu.memory_space<vmem>>, vector<16x1xf32>
      %78 = arith.mulf %76, %77 : vector<16x1xf32>
      %79 = vector.shape_cast %78 : vector<16x1xf32> to vector<16x1xf32>
      %80 = vector.broadcast %79 : vector<16x1xf32> to vector<16x128xf32>
      %c0_34 = arith.constant 0 : index
      %c0_35 = arith.constant 0 : index
      %81 = vector.load %arg9[%c0_34, %c0_35] : memref<16x128xf32, #tpu.memory_space<vmem>>, vector<16x128xf32>
      tpu.vector_store %arg9[%c0_34, %c0_35], %80 {strides = array<i32>} : memref<16x128xf32, #tpu.memory_space<vmem>>, vector<16x128xf32>,
    } else {
    }
    return
  }
  func.func @transform_0(%arg0: i32, %arg1: i32) -> (i32, i32) {
    %c0_i32 = arith.constant 0 : i32
    return %arg0, %arg1 : i32, i32
  }
  func.func @transform_1(%arg0: i32, %arg1: i32) -> (i32, i32) {
    %c0_i32 = arith.constant 0 : i32
    %c0_i32_0 = arith.constant 0 : i32
    return %arg1, %c0_i32 : i32, i32
  }
  func.func @transform_2(%arg0: i32, %arg1: i32) -> (i32, i32) {
    %c0_i32 = arith.constant 0 : i32
    %c0_i32_0 = arith.constant 0 : i32
    %c0_i32_1 = arith.constant 0 : i32
    return %c0_i32, %c0_i32_0 : i32, i32
  }
  func.func @transform_3(%arg0: i32, %arg1: i32) -> (i32, i32) {
    %c0_i32 = arith.constant 0 : i32
    %c0_i32_0 = arith.constant 0 : i32
    %c0_i32_1 = arith.constant 0 : i32
    return %c0_i32, %c0_i32_0 : i32, i32
  }
  func.func @transform_4(%arg0: i32, %arg1: i32) -> (i32, i32) {
    %c0_i32 = arith.constant 0 : i32
    %c0_i32_0 = arith.constant 0 : i32
    %c0_i32_1 = arith.constant 0 : i32
    return %c0_i32, %c0_i32_0 : i32, i32
  }
  func.func @transform_5(%arg0: i32, %arg1: i32) -> (i32, i32) {
    %c0_i32 = arith.constant 0 : i32
    %c0_i32_0 = arith.constant 0 : i32
    return %arg0, %c0_i32 : i32, i32
  }
  func.func @transform_6(%arg0: i32, %arg1: i32) -> (i32, i32) {
    %c0_i32 = arith.constant 0 : i32
    %c0_i32_0 = arith.constant 0 : i32
    return %arg0, %c0_i32 : i32, i32
  }
  func.func @transform_7(%arg0: i32, %arg1: i32) -> (i32, i32) {
    %c0_i32 = arith.constant 0 : i32
    %c0_i32_0 = arith.constant 0 : i32
    return %arg0, %c0_i32 : i32, i32
  }
}

</mosaic_0001>

<llo_original>
// kernel: tpu_custom_call.1
$region0: #{tpu_custom_call.1}
  #allocation0 [shape = 'u32[]', space=smem, size = 0x4, offset = 0x4, fixed_abs, tag = 'smem constant byte address 0x4 - core index']
  #allocation1 [shape = 'u32[144,128]{1,0:T(1,128)}', space=vmem, size = 0x12000, scoped, tag = 'internal scratch']
  #allocation2 [shape = 'f32[16,128]{1,0:T(8,128)}', space=vmem, size = 0x2000, scoped, tag = 'scratch operand']
  %s0 = inlined_call_operand.hbm [shape: bf16[16,1024], index: 0, kind: input, shape index: {}]
  %s1 = inlined_call_operand.hbm [shape: bf16[1024,128], index: 1, kind: input, shape index: {}]
  %s2 = inlined_call_operand.hbm [shape: f32[1,128], index: 2, kind: input, shape index: {}]
  %s3 = inlined_call_operand.hbm [shape: bf16[128,128], index: 3, kind: input, shape index: {}]
  %s4 = inlined_call_operand.hbm [shape: f32[1,128], index: 4, kind: input, shape index: {}]
  %s5 = inlined_call_operand.hbm [shape: f32[16,128], index: 5, kind: input, shape index: {}]
  %s6 = inlined_call_operand.hbm [shape: f32[16,1], index: 6, kind: input, shape index: {}]
  %s7 = inlined_call_operand.hbm [shape: f32[16,128], index: 7, kind: output, shape index: {}]
  %s8 = sld [smem:[#allocation0]]
  $region97: #{tpu_custom_call.1} parent=0
    _
  %s10 = ssub.s32 1, %s8
  %s11 = scalar_select 0, %s10, %s8
  $region1: #{tpu_custom_call.1} parent=0
    #allocation3 [shape = 'u8[32768]{0}', space=vmem, size = 0x8000, scoped, tag = 'input window, operand 0']
    #allocation4 [shape = 's32[2]{0}', space=sflag, size = 0x8, scoped, tag = 'scoped memory for tpu_custom_call.1']
    #allocation5 [shape = 's32[2]{0}', space=sflag, size = 0x8, scoped, tag = 'scoped memory for tpu_custom_call.1']
    #allocation6 [shape = 'u8[262144]{0}', space=vmem, size = 0x40000, scoped, tag = 'input window, operand 1']
    #allocation7 [shape = 's32[2]{0}', space=sflag, size = 0x8, scoped, tag = 'scoped memory for tpu_custom_call.1']
    #allocation8 [shape = 'u8[512]{0}', space=vmem, size = 0x400, scoped, tag = 'input window, operand 2, single buffered']
    #allocation9 [shape = 'u8[32768]{0}', space=vmem, size = 0x8000, scoped, tag = 'input window, operand 3, single buffered']
    #allocation10 [shape = 's32[1]{0}', space=sflag, size = 0x4, scoped, tag = 'scoped memory for tpu_custom_call.1']
    #allocation11 [shape = 'u8[512]{0}', space=vmem, size = 0x400, scoped, tag = 'input window, operand 4, single buffered']
    #allocation12 [shape = 'u8[8192]{0}', space=vmem, size = 0x2000, scoped, tag = 'input window, operand 5, single buffered']
    #allocation13 [shape = 's32[1]{0}', space=sflag, size = 0x4, scoped, tag = 'scoped memory for tpu_custom_call.1']
    #allocation14 [shape = 'u8[8192]{0}', space=vmem, size = 0x2000, scoped, tag = 'input window, operand 6, single buffered']
    #allocation15 [shape = 'u8[8192]{0}', space=vmem, size = 0x2000, scoped, tag = 'output window, operand 0, single buffered']
    %12 = vsyncpa [#allocation4], 0
    %s13 = scalar_lea.sflag [#allocation4], 1
    %14 = vsyncpa %s13, 0
    %15 = vsyncpa [#allocation7], 0
    %s16 = scalar_lea.sflag [#allocation7], 1
    %17 = vsyncpa %s16, 0
    %18 = vsyncpa [#allocation10], 0
    %19 = vsyncpa [#allocation13], 0
    %20 = vsyncpa [#allocation5], 0
    loop: start=0, step=1, limit=4
    $region2: #{tpu_custom_call.1} parent=1 // loop_pre_header
      _
    $region3: #{tpu_custom_call.1} parent=1 // loop_header
      %s22 = sphi 0, %s26
      %p23 = scmp.ge.s32.totalorder %s22, 4
      %s29 = sphi 0, %s41
      %s30 = sphi 0, %s37
      %s31 = sphi 0, %s29
      %s32 = sphi 0, %s30
      %s33 = sphi 0, %s31
      %s34 = sphi 0, %s32
      %s46 = sphi 0, %s48
      %s49 = sphi 0, %s46
      %s50 = sphi 0, %s49
      %s66 = sphi 0, %s50
      %s72 = sphi 0, %s74
      %s75 = sphi 0, %s72
      %s76 = sphi 0, %s75
      %s92 = sphi 0, %s76
      %s96 = sphi 0, %s96
      %s98 = sphi 0, %s96
      %s99 = sphi 0, %s98
      %s113 = sphi 0, %s99
      %s117 = sphi 0, %s117
      %s119 = sphi 0, %s117
      %s120 = sphi 0, %s119
      %s134 = sphi 0, %s120
      %s138 = sphi 0, %s138
      %s140 = sphi 0, %s138
      %s141 = sphi 0, %s140
      %s155 = sphi 0, %s141
      %s161 = sphi 0, %s163
      %s164 = sphi 0, %s161
      %s165 = sphi 0, %s164
      %s181 = sphi 0, %s165
      %s187 = sphi 0, %s189
      %s190 = sphi 0, %s187
      %s191 = sphi 0, %s190
      %s207 = sphi 0, %s191
      %s213 = sphi 0, %s215
      %s216 = sphi 0, %s213
      %s217 = sphi 0, %s216
      %s233 = sphi 0, %s217
    $region4: #{tpu_custom_call.1} parent=1 // loop_header_branch
      %25 = sbr.rel (%p23) target = $region8
    $region5: #{tpu_custom_call.1} parent=1 // loop_body
      %s27 = ssub.s32 %s22, 1
      %s28 = ssub.s32 %s22, 2
      %s35 = sadd.s32 1, %s30
      %p36 = scmp.ge.s32.totalorder %s35, 2
      %s37 = scalar_select %p36, 0, %s35
      %s38 = sadd.s32 1, %s29
      %s39 = scalar_select %p36, %s38, %s29
      %p40 = scmp.ge.s32.totalorder %s39, 1
      %s41 = scalar_select %p40, 0, %s39
      %s42 = ssub.s32 %s29, %s41
      %s43 = ssub.s32 %s30, %s37
      %s44 = sor.u32 %s42, %s43
      %p45 = scmp.eq.s32.totalorder %s44, 0
      %s47 = sadd.s32 %s46, 1
      %s48 = scalar_select %p45, %s46, %s47
      %p51 = pneg %p45
      %p52 = scmp.eq.s32.totalorder %s22, 1
      %p53 = por %p51, %p52
      %p54 = scmp.ne.s32.totalorder %s46, %s49
      %p55 = scmp.eq.s32.totalorder %s22, 0
      %p56 = por %p54, %p55
      %p57 = scmp.ne.s32.totalorder %s46, %s49
      %p58 = scmp.eq.s32.totalorder %s27, 1
      %p59 = por %p57, %p58
      %p60 = scmp.ne.s32.totalorder %s49, %s50
      %p61 = scmp.eq.s32.totalorder %s27, 0
      %p62 = por %p60, %p61
      %p63 = scmp.ne.s32.totalorder %s49, %s50
      %p64 = scmp.eq.s32.totalorder %s28, 1
      %p65 = por %p63, %p64
      %p67 = scmp.ne.s32.totalorder %s50, %s66
      %p68 = scmp.eq.s32.totalorder %s28, 0
      %p69 = por %p67, %p68
      %s70 = ssub.s32 %s30, %s37
      %p71 = scmp.eq.s32.totalorder %s70, 0
      %s73 = sadd.s32 %s72, 1
      %s74 = scalar_select %p71, %s72, %s73
      %p77 = pneg %p71
      %p78 = scmp.eq.s32.totalorder %s22, 1
      %p79 = por %p77, %p78
      %p80 = scmp.ne.s32.totalorder %s72, %s75
      %p81 = scmp.eq.s32.totalorder %s22, 0
      %p82 = por %p80, %p81
      %p83 = scmp.ne.s32.totalorder %s72, %s75
      %p84 = scmp.eq.s32.totalorder %s27, 1
      %p85 = por %p83, %p84
      %p86 = scmp.ne.s32.totalorder %s75, %s76
      %p87 = scmp.eq.s32.totalorder %s27, 0
      %p88 = por %p86, %p87
      %p89 = scmp.ne.s32.totalorder %s75, %s76
      %p90 = scmp.eq.s32.totalorder %s28, 1
      %p91 = por %p89, %p90
      %p93 = scmp.ne.s32.totalorder %s76, %s92
      %p94 = scmp.eq.s32.totalorder %s28, 0
      %p95 = por %p93, %p94
      %s97 = sadd.s32 %s96, 1
      %p100 = scmp.eq.s32.totalorder %s22, 1
      %p101 = scmp.ne.s32.totalorder %s96, %s98
      %p102 = scmp.eq.s32.totalorder %s22, 0
      %p103 = por %p101, %p102
      %p104 = scmp.ne.s32.totalorder %s96, %s98
      %p105 = scmp.eq.s32.totalorder %s27, 1
      %p106 = por %p104, %p105
      %p107 = scmp.ne.s32.totalorder %s98, %s99
      %p108 = scmp.eq.s32.totalorder %s27, 0
      %p109 = por %p107, %p108
      %p110 = scmp.ne.s32.totalorder %s98, %s99
      %p111 = scmp.eq.s32.totalorder %s28, 1
      %p112 = por %p110, %p111
      %p114 = scmp.ne.s32.totalorder %s99, %s113
      %p115 = scmp.eq.s32.totalorder %s28, 0
      %p116 = por %p114, %p115
      %s118 = sadd.s32 %s117, 1
      %p121 = scmp.eq.s32.totalorder %s22, 1
      %p122 = scmp.ne.s32.totalorder %s117, %s119
      %p123 = scmp.eq.s32.totalorder %s22, 0
      %p124 = por %p122, %p123
      %p125 = scmp.ne.s32.totalorder %s117, %s119
      %p126 = scmp.eq.s32.totalorder %s27, 1
      %p127 = por %p125, %p126
      %p128 = scmp.ne.s32.totalorder %s119, %s120
      %p129 = scmp.eq.s32.totalorder %s27, 0
      %p130 = por %p128, %p129
      %p131 = scmp.ne.s32.totalorder %s119, %s120
      %p132 = scmp.eq.s32.totalorder %s28, 1
      %p133 = por %p131, %p132
      %p135 = scmp.ne.s32.totalorder %s120, %s134
      %p136 = scmp.eq.s32.totalorder %s28, 0
      %p137 = por %p135, %p136
      %s139 = sadd.s32 %s138, 1
      %p142 = scmp.eq.s32.totalorder %s22, 1
      %p143 = scmp.ne.s32.totalorder %s138, %s140
      %p144 = scmp.eq.s32.totalorder %s22, 0
      %p145 = por %p143, %p144
      %p146 = scmp.ne.s32.totalorder %s138, %s140
      %p147 = scmp.eq.s32.totalorder %s27, 1
      %p148 = por %p146, %p147
      %p149 = scmp.ne.s32.totalorder %s140, %s141
      %p150 = scmp.eq.s32.totalorder %s27, 0
      %p151 = por %p149, %p150
      %p152 = scmp.ne.s32.totalorder %s140, %s141
      %p153 = scmp.eq.s32.totalorder %s28, 1
      %p154 = por %p152, %p153
      %p156 = scmp.ne.s32.totalorder %s141, %s155
      %p157 = scmp.eq.s32.totalorder %s28, 0
      %p158 = por %p156, %p157
      %s159 = ssub.s32 %s29, %s41
      %p160 = scmp.eq.s32.totalorder %s159, 0
      %s162 = sadd.s32 %s161, 1
      %s163 = scalar_select %p160, %s161, %s162
      %p166 = pneg %p160
      %p167 = scmp.eq.s32.totalorder %s22, 1
      %p168 = por %p166, %p167
      %p169 = scmp.ne.s32.totalorder %s161, %s164
      %p170 = scmp.eq.s32.totalorder %s22, 0
      %p171 = por %p169, %p170
      %p172 = scmp.ne.s32.totalorder %s161, %s164
      %p173 = scmp.eq.s32.totalorder %s27, 1
      %p174 = por %p172, %p173
      %p175 = scmp.ne.s32.totalorder %s164, %s165
      %p176 = scmp.eq.s32.totalorder %s27, 0
      %p177 = por %p175, %p176
      %p178 = scmp.ne.s32.totalorder %s164, %s165
      %p179 = scmp.eq.s32.totalorder %s28, 1
      %p180 = por %p178, %p179
      %p182 = scmp.ne.s32.totalorder %s165, %s181
      %p183 = scmp.eq.s32.totalorder %s28, 0
      %p184 = por %p182, %p183
      %s185 = ssub.s32 %s29, %s41
      %p186 = scmp.eq.s32.totalorder %s185, 0
      %s188 = sadd.s32 %s187, 1
      %s189 = scalar_select %p186, %s187, %s188
      %p192 = pneg %p186
      %p193 = scmp.eq.s32.totalorder %s22, 1
      %p194 = por %p192, %p193
      %p195 = scmp.ne.s32.totalorder %s187, %s190
      %p196 = scmp.eq.s32.totalorder %s22, 0
      %p197 = por %p195, %p196
      %p198 = scmp.ne.s32.totalorder %s187, %s190
      %p199 = scmp.eq.s32.totalorder %s27, 1
      %p200 = por %p198, %p199
      %p201 = scmp.ne.s32.totalorder %s190, %s191
      %p202 = scmp.eq.s32.totalorder %s27, 0
      %p203 = por %p201, %p202
      %p204 = scmp.ne.s32.totalorder %s190, %s191
      %p205 = scmp.eq.s32.totalorder %s28, 1
      %p206 = por %p204, %p205
      %p208 = scmp.ne.s32.totalorder %s191, %s207
      %p209 = scmp.eq.s32.totalorder %s28, 0
      %p210 = por %p208, %p209
      %s211 = ssub.s32 %s29, %s41
      %p212 = scmp.eq.s32.totalorder %s211, 0
      %s214 = sadd.s32 %s213, 1
      %s215 = scalar_select %p212, %s213, %s214
      %p218 = pneg %p212
      %p219 = scmp.eq.s32.totalorder %s22, 1
      %p220 = por %p218, %p219
      %p221 = scmp.ne.s32.totalorder %s213, %s216
      %p222 = scmp.eq.s32.totalorder %s22, 0
      %p223 = por %p221, %p222
      %p224 = scmp.ne.s32.totalorder %s213, %s216
      %p225 = scmp.eq.s32.totalorder %s27, 1
      %p226 = por %p224, %p225
      %p227 = scmp.ne.s32.totalorder %s216, %s217
      %p228 = scmp.eq.s32.totalorder %s27, 0
      %p229 = por %p227, %p228
      %p230 = scmp.ne.s32.totalorder %s216, %s217
      %p231 = scmp.eq.s32.totalorder %s28, 1
      %p232 = por %p230, %p231
      %p234 = scmp.ne.s32.totalorder %s217, %s233
      %p235 = scmp.eq.s32.totalorder %s28, 0
      %p236 = por %p234, %p235
      %p237 = scmp.le.s32.totalorder 1, %s22
      %p238 = scmp.lt.s32.totalorder %s22, 3
      %p239 = pnand %p237, %p238
      %p240 = pneg %p239
      // Predicated region
      $region9: #{tpu_custom_call.1} parent=5 // pred_check
        _
      $region10: #{tpu_custom_call.1} parent=5 // pred_check_branch
        %242 = sbr.rel (%p239) target = $region12
      $region11: #{tpu_custom_call.1} parent=5 // pred_region
        %s243 = ssub.s32 %s22, 1
        // Predicated region
        $region13: #{tpu_custom_call.1} parent=11 // pred_check
          %p244 = pneg %p109
        $region14: #{tpu_custom_call.1} parent=11 // pred_check_branch
          %246 = sbr.rel (%p244) target = $region16
        $region15: #{tpu_custom_call.1} parent=11 // pred_region
          %s248 = ssub.s32 16, 16
          %249 = vsyncadd [#allocation7], %s248
          %s251 = sshll.u32 [#allocation8], 4
          %s252 = int_to_ptr.vmem [resolvable:$true] %s251
          %254 = dma.hbm_to_vmem [thread:$0]  %s2, 16, %s252, [#allocation7]
        $region16: #{tpu_custom_call.1} parent=11 // pred_fallthru
          _
        // Predicated region
        $region17: #{tpu_custom_call.1} parent=11 // pred_check
          %p255 = pneg %p130
        $region18: #{tpu_custom_call.1} parent=11 // pred_check_branch
          %257 = sbr.rel (%p255) target = $region20
        $region19: #{tpu_custom_call.1} parent=11 // pred_region
          %s259 = ssub.s32 1024, 1024
          %260 = vsyncadd [#allocation10], %s259
          %s261 = sshll.u32 [#allocation9], 4
          %s262 = int_to_ptr.vmem [resolvable:$true] %s261
          %267 = dma.hbm_to_vmem [thread:$0]  %s3, 1024, %s262, [#allocation10], 64, 64, 4
        $region20: #{tpu_custom_call.1} parent=11 // pred_fallthru
          _
        // Predicated region
        $region21: #{tpu_custom_call.1} parent=11 // pred_check
          %p268 = pneg %p151
        $region22: #{tpu_custom_call.1} parent=11 // pred_check_branch
          %270 = sbr.rel (%p268) target = $region24
        $region23: #{tpu_custom_call.1} parent=11 // pred_region
          %s272 = ssub.s32 16, 16
          %273 = vsyncadd [#allocation10], %s272
          %s275 = sshll.u32 [#allocation11], 4
          %s276 = int_to_ptr.vmem [resolvable:$true] %s275
          %278 = dma.hbm_to_vmem [thread:$0]  %s4, 16, %s276, [#allocation10]
        $region24: #{tpu_custom_call.1} parent=11 // pred_fallthru
          _
        // Predicated region
        $region25: #{tpu_custom_call.1} parent=11 // pred_check
          %p279 = pneg %p177
        $region26: #{tpu_custom_call.1} parent=11 // pred_check_branch
          %281 = sbr.rel (%p279) target = $region28
        $region27: #{tpu_custom_call.1} parent=11 // pred_region
          %s282 = smul.u32 2, %s31
          %s284 = ssub.s32 256, 256
          %285 = vsyncadd [#allocation13], %s284
          %s286 = smul.addr %s282, 128
          %s287 = scalar_lea.hbm %s5, %s286
          %s288 = sshll.u32 [#allocation12], 4
          %s289 = int_to_ptr.vmem [resolvable:$true] %s288
          %294 = dma.hbm_to_vmem [thread:$0]  %s287, 256, %s289, [#allocation13], 128, 128, 8
        $region28: #{tpu_custom_call.1} parent=11 // pred_fallthru
          _
        // Predicated region
        $region29: #{tpu_custom_call.1} parent=11 // pred_check
          %p295 = pneg %p203
        $region30: #{tpu_custom_call.1} parent=11 // pred_check_branch
          %297 = sbr.rel (%p295) target = $region32
        $region31: #{tpu_custom_call.1} parent=11 // pred_region
          %s298 = smul.u32 2, %s31
          %s300 = ssub.s32 256, 256
          %301 = vsyncadd [#allocation13], %s300
          %s302 = smul.addr %s298, 128
          %s303 = scalar_lea.hbm %s6, %s302
          %s304 = sshll.u32 [#allocation14], 4
          %s305 = int_to_ptr.vmem [resolvable:$true] %s304
          %310 = dma.hbm_to_vmem [thread:$0]  %s303, 256, %s305, [#allocation13], 128, 128, 8
        $region32: #{tpu_custom_call.1} parent=11 // pred_fallthru
          _
      $region12: #{tpu_custom_call.1} parent=5 // pred_fallthru
        _
      %p311 = scmp.lt.s32.totalorder %s22, 2
      // Predicated region
      $region33: #{tpu_custom_call.1} parent=5 // pred_check
        %p312 = pneg %p311
      $region34: #{tpu_custom_call.1} parent=5 // pred_check_branch
        %314 = sbr.rel (%p312) target = $region36
      $region35: #{tpu_custom_call.1} parent=5 // pred_region
        // Predicated region
        $region37: #{tpu_custom_call.1} parent=35 // pred_check
          %p315 = pneg %p56
        $region38: #{tpu_custom_call.1} parent=35 // pred_check_branch
          %317 = sbr.rel (%p315) target = $region40
        $region39: #{tpu_custom_call.1} parent=35 // pred_region
          %s318 = sand.u32 %s46, 1
          %s319 = scalar_lea.sflag [#allocation4], %s318
          %s320 = sand.u32 %s46, 1
          %s321 = smul.addr %s320, 32
          %s322 = scalar_lea.vmem [#allocation3], %s321
          %s323 = smul.u32 2, %s29
          %s324 = smul.u32 4, %s30
          %s326 = ssub.s32 512, 512
          %327 = vsyncadd %s319, %s326
          %s328 = smul.addr %s323, 8
          %s329 = sadd.s32 %s324, %s328
          %s330 = smul.addr %s329, 64
          %s331 = scalar_lea.hbm %s0, %s330
          %s332 = sshll.u32 %s322, 4
          %s333 = int_to_ptr.vmem [resolvable:$true] %s332
          %338 = dma.hbm_to_vmem [thread:$0]  %s331, 512, %s333, %s319, 512, 256, 16
        $region40: #{tpu_custom_call.1} parent=35 // pred_fallthru
          _
        // Predicated region
        $region41: #{tpu_custom_call.1} parent=35 // pred_check
          %p339 = pneg %p82
        $region42: #{tpu_custom_call.1} parent=35 // pred_check_branch
          %341 = sbr.rel (%p339) target = $region44
        $region43: #{tpu_custom_call.1} parent=35 // pred_region
          %s342 = sand.u32 %s22, 1
          %s343 = scalar_lea.sflag [#allocation7], %s342
          %s344 = sand.u32 %s72, 1
          %s345 = smul.addr %s344, 256
          %s346 = scalar_lea.vmem [#allocation6], %s345
          %s347 = smul.u32 64, %s30
          %s349 = ssub.s32 4096, 4096
          %350 = vsyncadd %s343, %s349
          %s351 = smul.addr %s347, 64
          %s352 = scalar_lea.hbm %s1, %s351
          %s353 = sshll.u32 %s346, 4
          %s354 = int_to_ptr.vmem [resolvable:$true] %s353
          %359 = dma.hbm_to_vmem [thread:$0]  %s352, 4096, %s354, %s343, 64, 64, 4
        $region44: #{tpu_custom_call.1} parent=35 // pred_fallthru
          _
      $region36: #{tpu_custom_call.1} parent=5 // pred_fallthru
        _
      %p360 = scmp.le.s32.totalorder 1, %s22
      %p361 = scmp.lt.s32.totalorder %s22, 3
      %p362 = pnand %p360, %p361
      %p363 = pneg %p362
      // Predicated region
      $region45: #{tpu_custom_call.1} parent=5 // pred_check
        _
      $region46: #{tpu_custom_call.1} parent=5 // pred_check_branch
        %365 = sbr.rel (%p362) target = $region48
      $region47: #{tpu_custom_call.1} parent=5 // pred_region
        %s366 = ssub.s32 %s22, 1
        %s367 = sand.u32 %s49, 1
        %s368 = scalar_lea.sflag [#allocation4], %s367
        %s369 = sand.u32 %s49, 1
        %s370 = smul.addr %s369, 32
        %s371 = scalar_lea.vmem [#allocation3], %s370
        // Predicated region
        $region49: #{tpu_custom_call.1} parent=47 // pred_check
          %p372 = pneg %p62
        $region50: #{tpu_custom_call.1} parent=47 // pred_check_branch
          %374 = sbr.rel (%p372) target = $region52
        $region51: #{tpu_custom_call.1} parent=47 // pred_region
          %375 = dma.done %s368, 512
        $region52: #{tpu_custom_call.1} parent=47 // pred_fallthru
          _
        %s376 = sand.u32 %s27, 1
        %s377 = scalar_lea.sflag [#allocation7], %s376
        %s378 = sand.u32 %s75, 1
        %s379 = smul.addr %s378, 256
        %s380 = scalar_lea.vmem [#allocation6], %s379
        // Predicated region
        $region53: #{tpu_custom_call.1} parent=47 // pred_check
          %p381 = pneg %p88
        $region54: #{tpu_custom_call.1} parent=47 // pred_check_branch
          %383 = sbr.rel (%p381) target = $region56
        $region55: #{tpu_custom_call.1} parent=47 // pred_region
          %384 = dma.done %s377, 4096
        $region56: #{tpu_custom_call.1} parent=47 // pred_fallthru
          _
        // Predicated region
        $region57: #{tpu_custom_call.1} parent=47 // pred_check
          %p385 = pneg %p109
        $region58: #{tpu_custom_call.1} parent=47 // pred_check_branch
          %387 = sbr.rel (%p385) target = $region60
        $region59: #{tpu_custom_call.1} parent=47 // pred_region
          %388 = dma.done [#allocation7], 16
        $region60: #{tpu_custom_call.1} parent=47 // pred_fallthru
          _
        // Predicated region
        $region61: #{tpu_custom_call.1} parent=47 // pred_check
          %p389 = pneg %p130
        $region62: #{tpu_custom_call.1} parent=47 // pred_check_branch
          %391 = sbr.rel (%p389) target = $region64
        $region63: #{tpu_custom_call.1} parent=47 // pred_region
          %392 = dma.done [#allocation10], 1024
        $region64: #{tpu_custom_call.1} parent=47 // pred_fallthru
          _
        // Predicated region
        $region65: #{tpu_custom_call.1} parent=47 // pred_check
          %p393 = pneg %p151
        $region66: #{tpu_custom_call.1} parent=47 // pred_check_branch
          %395 = sbr.rel (%p393) target = $region68
        $region67: #{tpu_custom_call.1} parent=47 // pred_region
          %396 = dma.done [#allocation10], 16
        $region68: #{tpu_custom_call.1} parent=47 // pred_fallthru
          _
        // Predicated region
        $region69: #{tpu_custom_call.1} parent=47 // pred_check
          %p397 = pneg %p177
        $region70: #{tpu_custom_call.1} parent=47 // pred_check_branch
          %399 = sbr.rel (%p397) target = $region72
        $region71: #{tpu_custom_call.1} parent=47 // pred_region
          %400 = dma.done [#allocation13], 256
        $region72: #{tpu_custom_call.1} parent=47 // pred_fallthru
          _
        // Predicated region
        $region73: #{tpu_custom_call.1} parent=47 // pred_check
          %p401 = pneg %p203
        $region74: #{tpu_custom_call.1} parent=47 // pred_check_branch
          %403 = sbr.rel (%p401) target = $region76
        $region75: #{tpu_custom_call.1} parent=47 // pred_region
          %404 = dma.done [#allocation13], 256
        $region76: #{tpu_custom_call.1} parent=47 // pred_fallthru
          _
        %s405 = sand.u32 %s49, 1
        %s406 = scalar_lea.sflag [#allocation4], %s405
        %s407 = sand.u32 %s49, 1
        %s408 = smul.addr %s407, 32
        %s409 = scalar_lea.vmem [#allocation3], %s408
        %p410 = pneg %p62
        %p411 = pneg %p59
        %s412 = sand.u32 %s27, 1
        %s413 = scalar_lea.sflag [#allocation7], %s412
        %s414 = sand.u32 %s75, 1
        %s415 = smul.addr %s414, 256
        %s416 = scalar_lea.vmem [#allocation6], %s415
        %p417 = pneg %p88
        %p418 = pneg %p85
        %p419 = pneg %p109
        %p420 = pneg %p106
        %p421 = pneg %p130
        %p422 = pneg %p127
        %p423 = pneg %p151
        %p424 = pneg %p148
        %p425 = pneg %p177
        %p426 = pneg %p174
        %p427 = pneg %p203
        %p428 = pneg %p200
        %p429 = pneg %p229
        %p430 = pneg %p226
        %s431 = smul.u32 2, %s31
        %s432 = smul.u32 4, %s32
        %s433 = smul.u32 64, %s32
        %s434 = smul.u32 2, %s31
        %s435 = smul.u32 2, %s31
        %s436 = smul.u32 2, %s31
        %p438 = scmp.eq.s32.totalorder %s32, 0
        // Predicated region
        $region77: #{tpu_custom_call.1} parent=47 // pred_check
          %p439 = pneg %p438
        $region78: #{tpu_custom_call.1} parent=47 // pred_check_branch
          %441 = sbr.rel (%p439) target = $region80
        $region79: #{tpu_custom_call.1} parent=47 // pred_region
          %442 = vst [vmem:[#allocation2] sm:$0xff] 0.0
          %443 = vst [vmem:[#allocation2 + $0x8] sm:$0xff] 0.0
        $region80: #{tpu_custom_call.1} parent=47 // pred_fallthru
          _
        %v444 = vld [vmem:[#allocation2] sm:$0xff]
        %v445 = vld [vmem:[#allocation2 + $0x8] sm:$0xff]
        %v446 = vld [vmem:[%s371] sm:$0xff]
        %v447 = vld [vmem:[%s371 + $0x8] sm:$0xff]
        %v448 = vld [vmem:[%s371 + $0x10] sm:$0xff]
        %v449 = vld [vmem:[%s371 + $0x18] sm:$0xff]
        %v450 = vld [vmem:[%s380] sm:$0xf]
        %v451 = vld [vmem:[%s380 + $0x4] sm:$0xf]
        %v452 = vld [vmem:[%s380 + $0x8] sm:$0xf]
        %v453 = vld [vmem:[%s380 + $0xc] sm:$0xf]
        %v454 = vld [vmem:[%s380 + $0x10] sm:$0xf]
        %v455 = vld [vmem:[%s380 + $0x14] sm:$0xf]
        %v456 = vld [vmem:[%s380 + $0x18] sm:$0xf]
        %v457 = vld [vmem:[%s380 + $0x1c] sm:$0xf]
        %v458 = vld [vmem:[%s380 + $0x20] sm:$0xf]
        %v459 = vld [vmem:[%s380 + $0x24] sm:$0xf]
        %v460 = vld [vmem:[%s380 + $0x28] sm:$0xf]
        %v461 = vld [vmem:[%s380 + $0x2c] sm:$0xf]
        %v462 = vld [vmem:[%s380 + $0x30] sm:$0xf]
        %v463 = vld [vmem:[%s380 + $0x34] sm:$0xf]
        %v464 = vld [vmem:[%s380 + $0x38] sm:$0xf]
        %v465 = vld [vmem:[%s380 + $0x3c] sm:$0xf]
        %v466 = vld [vmem:[%s380 + $0x40] sm:$0xf]
        %v467 = vld [vmem:[%s380 + $0x44] sm:$0xf]
        %v468 = vld [vmem:[%s380 + $0x48] sm:$0xf]
        %v469 = vld [vmem:[%s380 + $0x4c] sm:$0xf]
        %v470 = vld [vmem:[%s380 + $0x50] sm:$0xf]
        %v471 = vld [vmem:[%s380 + $0x54] sm:$0xf]
        %v472 = vld [vmem:[%s380 + $0x58] sm:$0xf]
        %v473 = vld [vmem:[%s380 + $0x5c] sm:$0xf]
        %v474 = vld [vmem:[%s380 + $0x60] sm:$0xf]
        %v475 = vld [vmem:[%s380 + $0x64] sm:$0xf]
        %v476 = vld [vmem:[%s380 + $0x68] sm:$0xf]
        %v477 = vld [vmem:[%s380 + $0x6c] sm:$0xf]
        %v478 = vld [vmem:[%s380 + $0x70] sm:$0xf]
        %v479 = vld [vmem:[%s380 + $0x74] sm:$0xf]
        %v480 = vld [vmem:[%s380 + $0x78] sm:$0xf]
        %v481 = vld [vmem:[%s380 + $0x7c] sm:$0xf]
        %v482 = vld [vmem:[%s380 + $0x80] sm:$0xf]
        %v483 = vld [vmem:[%s380 + $0x84] sm:$0xf]
        %v484 = vld [vmem:[%s380 + $0x88] sm:$0xf]
        %v485 = vld [vmem:[%s380 + $0x8c] sm:$0xf]
        %v486 = vld [vmem:[%s380 + $0x90] sm:$0xf]
        %v487 = vld [vmem:[%s380 + $0x94] sm:$0xf]
        %v488 = vld [vmem:[%s380 + $0x98] sm:$0xf]
        %v489 = vld [vmem:[%s380 + $0x9c] sm:$0xf]
        %v490 = vld [vmem:[%s380 + $0xa0] sm:$0xf]
        %v491 = vld [vmem:[%s380 + $0xa4] sm:$0xf]
        %v492 = vld [vmem:[%s380 + $0xa8] sm:$0xf]
        %v493 = vld [vmem:[%s380 + $0xac] sm:$0xf]
        %v494 = vld [vmem:[%s380 + $0xb0] sm:$0xf]
        %v495 = vld [vmem:[%s380 + $0xb4] sm:$0xf]
        %v496 = vld [vmem:[%s380 + $0xb8] sm:$0xf]
        %v497 = vld [vmem:[%s380 + $0xbc] sm:$0xf]
        %v498 = vld [vmem:[%s380 + $0xc0] sm:$0xf]
        %v499 = vld [vmem:[%s380 + $0xc4] sm:$0xf]
        %v500 = vld [vmem:[%s380 + $0xc8] sm:$0xf]
        %v501 = vld [vmem:[%s380 + $0xcc] sm:$0xf]
        %v502 = vld [vmem:[%s380 + $0xd0] sm:$0xf]
        %v503 = vld [vmem:[%s380 + $0xd4] sm:$0xf]
        %v504 = vld [vmem:[%s380 + $0xd8] sm:$0xf]
        %v505 = vld [vmem:[%s380 + $0xdc] sm:$0xf]
        %v506 = vld [vmem:[%s380 + $0xe0] sm:$0xf]
        %v507 = vld [vmem:[%s380 + $0xe4] sm:$0xf]
        %v508 = vld [vmem:[%s380 + $0xe8] sm:$0xf]
        %v509 = vld [vmem:[%s380 + $0xec] sm:$0xf]
        %v510 = vld [vmem:[%s380 + $0xf0] sm:$0xf]
        %v511 = vld [vmem:[%s380 + $0xf4] sm:$0xf]
        %v512 = vld [vmem:[%s380 + $0xf8] sm:$0xf]
        %v513 = vld [vmem:[%s380 + $0xfc] sm:$0xf]
        %v518 = vunpack.c.l.b16 %v446
        %v519 = vunpack.c.h.b16 %v446
        %v520 = vunpack.c.l.b16 %v447
        %v521 = vunpack.c.h.b16 %v447
        %v522 = vunpack.c.l.b16 %v448
        %v523 = vunpack.c.h.b16 %v448
        %v524 = vunpack.c.l.b16 %v449
        %v525 = vunpack.c.h.b16 %v449
        %v526 = vpack.c.b16 %v522, %v518
        %v527 = vpack.c.b16 %v523, %v519
        %v528 = vpack.c.b16 %v524, %v520
        %v529 = vpack.c.b16 %v525, %v521
        %v598 = vunpack.c.l.b16 %v450
        %v599 = vunpack.c.l.b16 %v451
        %v600 = vunpack.c.l.b16 %v452
        %v601 = vunpack.c.l.b16 %v453
        %v602 = vunpack.c.l.b16 %v454
        %v603 = vunpack.c.l.b16 %v455
        %v604 = vunpack.c.l.b16 %v456
        %v605 = vunpack.c.l.b16 %v457
        %v606 = vunpack.c.l.b16 %v458
        %v607 = vunpack.c.l.b16 %v459
        %v608 = vunpack.c.l.b16 %v460
        %v609 = vunpack.c.l.b16 %v461
        %v610 = vunpack.c.l.b16 %v462
        %v611 = vunpack.c.l.b16 %v463
        %v612 = vunpack.c.l.b16 %v464
        %v613 = vunpack.c.l.b16 %v465
        %v614 = vunpack.c.l.b16 %v466
        %v615 = vunpack.c.l.b16 %v467
        %v616 = vunpack.c.l.b16 %v468
        %v617 = vunpack.c.l.b16 %v469
        %v618 = vunpack.c.l.b16 %v470
        %v619 = vunpack.c.l.b16 %v471
        %v620 = vunpack.c.l.b16 %v472
        %v621 = vunpack.c.l.b16 %v473
        %v622 = vunpack.c.l.b16 %v474
        %v623 = vunpack.c.l.b16 %v475
        %v624 = vunpack.c.l.b16 %v476
        %v625 = vunpack.c.l.b16 %v477
        %v626 = vunpack.c.l.b16 %v478
        %v627 = vunpack.c.l.b16 %v479
        %v628 = vunpack.c.l.b16 %v480
        %v629 = vunpack.c.l.b16 %v481
        %v630 = vunpack.c.l.b16 %v482
        %v631 = vunpack.c.l.b16 %v483
        %v632 = vunpack.c.l.b16 %v484
        %v633 = vunpack.c.l.b16 %v485
        %v634 = vunpack.c.l.b16 %v486
        %v635 = vunpack.c.l.b16 %v487
        %v636 = vunpack.c.l.b16 %v488
        %v637 = vunpack.c.l.b16 %v489
        %v638 = vunpack.c.l.b16 %v490
        %v639 = vunpack.c.l.b16 %v491
        %v640 = vunpack.c.l.b16 %v492
        %v641 = vunpack.c.l.b16 %v493
        %v642 = vunpack.c.l.b16 %v494
        %v643 = vunpack.c.l.b16 %v495
        %v644 = vunpack.c.l.b16 %v496
        %v645 = vunpack.c.l.b16 %v497
        %v646 = vunpack.c.l.b16 %v498
        %v647 = vunpack.c.l.b16 %v499
        %v648 = vunpack.c.l.b16 %v500
        %v649 = vunpack.c.l.b16 %v501
        %v650 = vunpack.c.l.b16 %v502
        %v651 = vunpack.c.l.b16 %v503
        %v652 = vunpack.c.l.b16 %v504
        %v653 = vunpack.c.l.b16 %v505
        %v654 = vunpack.c.l.b16 %v506
        %v655 = vunpack.c.l.b16 %v507
        %v656 = vunpack.c.l.b16 %v508
        %v657 = vunpack.c.l.b16 %v509
        %v658 = vunpack.c.l.b16 %v510
        %v659 = vunpack.c.l.b16 %v511
        %v660 = vunpack.c.l.b16 %v512
        %v661 = vunpack.c.l.b16 %v513
        %v662 = vpack.c.b16 %v599, %v598
        %v663 = vpack.c.b16 %v601, %v600
        %v664 = vpack.c.b16 %v603, %v602
        %v665 = vpack.c.b16 %v605, %v604
        %v666 = vpack.c.b16 %v607, %v606
        %v667 = vpack.c.b16 %v609, %v608
        %v668 = vpack.c.b16 %v611, %v610
        %v669 = vpack.c.b16 %v613, %v612
        %v670 = vpack.c.b16 %v615, %v614
        %v671 = vpack.c.b16 %v617, %v616
        %v672 = vpack.c.b16 %v619, %v618
        %v673 = vpack.c.b16 %v621, %v620
        %v674 = vpack.c.b16 %v623, %v622
        %v675 = vpack.c.b16 %v625, %v624
        %v676 = vpack.c.b16 %v627, %v626
        %v677 = vpack.c.b16 %v629, %v628
        %v678 = vpack.c.b16 %v631, %v630
        %v679 = vpack.c.b16 %v633, %v632
        %v680 = vpack.c.b16 %v635, %v634
        %v681 = vpack.c.b16 %v637, %v636
        %v682 = vpack.c.b16 %v639, %v638
        %v683 = vpack.c.b16 %v641, %v640
        %v684 = vpack.c.b16 %v643, %v642
        %v685 = vpack.c.b16 %v645, %v644
        %v686 = vpack.c.b16 %v647, %v646
        %v687 = vpack.c.b16 %v649, %v648
        %v688 = vpack.c.b16 %v651, %v650
        %v689 = vpack.c.b16 %v653, %v652
        %v690 = vpack.c.b16 %v655, %v654
        %v691 = vpack.c.b16 %v657, %v656
        %v692 = vpack.c.b16 %v659, %v658
        %v693 = vpack.c.b16 %v661, %v660
        %726 = vmatprep.subr.bf16.mxu0 0
        %727 = vmatpush1.bf16.msra.mxu0 %v662
        %728 = vmatprep.subr.bf16.mxu0 0
        %729 = vmatpush1.bf16.msra.mxu0 %v663
        %730 = vmatprep.subr.bf16.mxu0 0
        %731 = vmatpush1.bf16.msra.mxu0 %v664
        %732 = vmatprep.subr.bf16.mxu0 0
        %733 = vmatpush1.bf16.msra.mxu0 %v665
        %734 = vmatprep.subr.bf16.mxu0 0
        %735 = vmatpush1.bf16.msra.mxu0 %v666
        %736 = vmatprep.subr.bf16.mxu0 0
        %737 = vmatpush1.bf16.msra.mxu0 %v667
        %738 = vmatprep.subr.bf16.mxu0 0
        %739 = vmatpush1.bf16.msra.mxu0 %v668
        %740 = vmatprep.subr.bf16.mxu0 0
        %741 = vmatpush1.bf16.msra.mxu0 %v669
        %742 = vmatprep.subr.bf16.mxu0 0
        %743 = vmatpush1.bf16.msra.mxu0 %v670
        %744 = vmatprep.subr.bf16.mxu0 0
        %745 = vmatpush1.bf16.msra.mxu0 %v671
        %746 = vmatprep.subr.bf16.mxu0 0
        %747 = vmatpush1.bf16.msra.mxu0 %v672
        %748 = vmatprep.subr.bf16.mxu0 0
        %749 = vmatpush1.bf16.msra.mxu0 %v673
        %750 = vmatprep.subr.bf16.mxu0 0
        %751 = vmatpush1.bf16.msra.mxu0 %v674
        %752 = vmatprep.subr.bf16.mxu0 0
        %753 = vmatpush1.bf16.msra.mxu0 %v675
        %754 = vmatprep.subr.bf16.mxu0 0
        %755 = vmatpush1.bf16.msra.mxu0 %v676
        %756 = vmatprep.subr.bf16.mxu0 0
        %757 = vmatpush1.bf16.msra.mxu0 %v677
        %758 = vmatprep.mubr.bf16.mxu0 %v527
        %759 = vmatmul.mubr.bf16.gmra.mrb[0].mxu0 %v526
        %v760 = vpop.f32.mrb[0].mxu0
        %v761 = vadd.f32 0.0, %v760
        %v762 = vpop.f32.mrb[0].mxu0
        %v763 = vpop.f32.mrb[0].mxu0
        %v764 = vadd.f32 0.0, %v763
        %v765 = vpop.f32.mrb[0].mxu0
        %766 = vdwg.mxu0
        %767 = vmatprep.subr.bf16.mxu0 0
        %768 = vmatpush1.bf16.msra.mxu0 %v678
        %769 = vmatprep.subr.bf16.mxu0 0
        %770 = vmatpush1.bf16.msra.mxu0 %v679
        %771 = vmatprep.subr.bf16.mxu0 0
        %772 = vmatpush1.bf16.msra.mxu0 %v680
        %773 = vmatprep.subr.bf16.mxu0 0
        %774 = vmatpush1.bf16.msra.mxu0 %v681
        %775 = vmatprep.subr.bf16.mxu0 0
        %776 = vmatpush1.bf16.msra.mxu0 %v682
        %777 = vmatprep.subr.bf16.mxu0 0
        %778 = vmatpush1.bf16.msra.mxu0 %v683
        %779 = vmatprep.subr.bf16.mxu0 0
        %780 = vmatpush1.bf16.msra.mxu0 %v684
        %781 = vmatprep.subr.bf16.mxu0 0
        %782 = vmatpush1.bf16.msra.mxu0 %v685
        %783 = vmatprep.subr.bf16.mxu0 0
        %784 = vmatpush1.bf16.msra.mxu0 %v686
        %785 = vmatprep.subr.bf16.mxu0 0
        %786 = vmatpush1.bf16.msra.mxu0 %v687
        %787 = vmatprep.subr.bf16.mxu0 0
        %788 = vmatpush1.bf16.msra.mxu0 %v688
        %789 = vmatprep.subr.bf16.mxu0 0
        %790 = vmatpush1.bf16.msra.mxu0 %v689
        %791 = vmatprep.subr.bf16.mxu0 0
        %792 = vmatpush1.bf16.msra.mxu0 %v690
        %793 = vmatprep.subr.bf16.mxu0 0
        %794 = vmatpush1.bf16.msra.mxu0 %v691
        %795 = vmatprep.subr.bf16.mxu0 0
        %796 = vmatpush1.bf16.msra.mxu0 %v692
        %797 = vmatprep.subr.bf16.mxu0 0
        %798 = vmatpush1.bf16.msra.mxu0 %v693
        %799 = vmatprep.mubr.bf16.mxu0 %v529
        %800 = vmatmul.mubr.bf16.gmra.mrb[0].mxu0 %v528
        %v801 = vpop.f32.mrb[0].mxu0
        %v802 = vadd.f32 %v761, %v801
        %v803 = vpop.f32.mrb[0].mxu0
        %v804 = vpop.f32.mrb[0].mxu0
        %v805 = vadd.f32 %v764, %v804
        %v806 = vpop.f32.mrb[0].mxu0
        %807 = vdwg.mxu0
        %v808 = vadd.f32 %v444, %v802
        %v809 = vadd.f32 %v445, %v805
        %810 = vst [vmem:[#allocation2] sm:$0xff] %v808
        %811 = vst [vmem:[#allocation2 + $0x8] sm:$0xff] %v809
        %p812 = scmp.eq.s32.totalorder %s32, 1
        // Predicated region
        $region81: #{tpu_custom_call.1} parent=47 // pred_check
          %p813 = pneg %p812
        $region82: #{tpu_custom_call.1} parent=47 // pred_check_branch
          %815 = sbr.rel (%p813) target = $region84
        $region83: #{tpu_custom_call.1} parent=47 // pred_region
          %v816 = vld [vmem:[#allocation2] sm:$0xff]
          %v817 = vld [vmem:[#allocation2 + $0x8] sm:$0xff]
          %v818 = vld [vmem:[#allocation8] sm:$0x1]
          %v820 = vlaneseq
          %v821 = vshrl.u32 %v820, 7
          %v822 = vsub.s32 0, %v821
          %v823 = vrot.slane %v818, %v822
          %v825 = vadd.f32 %v816, %v823
          %v826 = vadd.f32 %v817, %v823
          %v827 = vmax.f32 %v825, 0.0
          %v828 = vmax.f32 %v826, 0.0
          %v829 = vpack.c.bf16 %v828, %v827
          %v830 = vld [vmem:[#allocation9] sm:$0xf]
          %v831 = vld [vmem:[#allocation9 + $0x4] sm:$0xf]
          %v832 = vld [vmem:[#allocation9 + $0x8] sm:$0xf]
          %v833 = vld [vmem:[#allocation9 + $0xc] sm:$0xf]
          %v834 = vld [vmem:[#allocation9 + $0x10] sm:$0xf]
          %v835 = vld [vmem:[#allocation9 + $0x14] sm:$0xf]
          %v836 = vld [vmem:[#allocation9 + $0x18] sm:$0xf]
          %v837 = vld [vmem:[#allocation9 + $0x1c] sm:$0xf]
          %v838 = vld [vmem:[#allocation9 + $0x20] sm:$0xf]
          %v839 = vld [vmem:[#allocation9 + $0x24] sm:$0xf]
          %v840 = vld [vmem:[#allocation9 + $0x28] sm:$0xf]
          %v841 = vld [vmem:[#allocation9 + $0x2c] sm:$0xf]
          %v842 = vld [vmem:[#allocation9 + $0x30] sm:$0xf]
          %v843 = vld [vmem:[#allocation9 + $0x34] sm:$0xf]
          %v844 = vld [vmem:[#allocation9 + $0x38] sm:$0xf]
          %v845 = vld [vmem:[#allocation9 + $0x3c] sm:$0xf]
          %v846 = vld [vmem:[#allocation11] sm:$0x1]
          %v848 = vlaneseq
          %v849 = vshrl.u32 %v848, 7
          %v850 = vsub.s32 0, %v849
          %v851 = vrot.slane %v846, %v850
          %v869 = vunpack.c.l.b16 %v830
          %v870 = vunpack.c.l.b16 %v831
          %v871 = vunpack.c.l.b16 %v832
          %v872 = vunpack.c.l.b16 %v833
          %v873 = vunpack.c.l.b16 %v834
          %v874 = vunpack.c.l.b16 %v835
          %v875 = vunpack.c.l.b16 %v836
          %v876 = vunpack.c.l.b16 %v837
          %v877 = vunpack.c.l.b16 %v838
          %v878 = vunpack.c.l.b16 %v839
          %v879 = vunpack.c.l.b16 %v840
          %v880 = vunpack.c.l.b16 %v841
          %v881 = vunpack.c.l.b16 %v842
          %v882 = vunpack.c.l.b16 %v843
          %v883 = vunpack.c.l.b16 %v844
          %v884 = vunpack.c.l.b16 %v845
          %v885 = vpack.c.b16 %v870, %v869
          %v886 = vpack.c.b16 %v872, %v871
          %v887 = vpack.c.b16 %v874, %v873
          %v888 = vpack.c.b16 %v876, %v875
          %v889 = vpack.c.b16 %v878, %v877
          %v890 = vpack.c.b16 %v880, %v879
          %v891 = vpack.c.b16 %v882, %v881
          %v892 = vpack.c.b16 %v884, %v883
          %901 = vmatprep.subr.bf16.mxu0 0
          %902 = vmatpush1.bf16.msra.mxu0 %v885
          %903 = vmatprep.subr.bf16.mxu0 0
          %904 = vmatpush1.bf16.msra.mxu0 %v886
          %905 = vmatprep.subr.bf16.mxu0 0
          %906 = vmatpush1.bf16.msra.mxu0 %v887
          %907 = vmatprep.subr.bf16.mxu0 0
          %908 = vmatpush1.bf16.msra.mxu0 %v888
          %909 = vmatprep.subr.bf16.mxu0 0
          %910 = vmatpush1.bf16.msra.mxu0 %v889
          %911 = vmatprep.subr.bf16.mxu0 0
          %912 = vmatpush1.bf16.msra.mxu0 %v890
          %913 = vmatprep.subr.bf16.mxu0 0
          %914 = vmatpush1.bf16.msra.mxu0 %v891
          %915 = vmatprep.subr.bf16.mxu0 0
          %916 = vmatpush1.bf16.msra.mxu0 %v892
          %917 = vmatprep.subr.bf16.mxu0 0
          %918 = vmatpush1.bf16.msra.mxu0 0
          %919 = vmatprep.subr.bf16.mxu0 0
          %920 = vmatpush1.bf16.msra.mxu0 0
          %921 = vmatprep.subr.bf16.mxu0 0
          %922 = vmatpush1.bf16.msra.mxu0 0
          %923 = vmatprep.subr.bf16.mxu0 0
          %924 = vmatpush1.bf16.msra.mxu0 0
          %925 = vmatprep.subr.bf16.mxu0 0
          %926 = vmatpush1.bf16.msra.mxu0 0
          %927 = vmatprep.subr.bf16.mxu0 0
          %928 = vmatpush1.bf16.msra.mxu0 0
          %929 = vmatprep.subr.bf16.mxu0 0
          %930 = vmatpush1.bf16.msra.mxu0 0
          %931 = vmatprep.subr.bf16.mxu0 0
          %932 = vmatpush1.bf16.msra.mxu0 0
          %933 = vmatprep.mubr.bf16.mxu0 0
          %934 = vmatmul.mubr.bf16.gmra.mrb[0].mxu0 %v829
          %v935 = vpop.f32.mrb[0].mxu0
          %v936 = vadd.f32 %v851, %v935
          %v937 = vpop.f32.mrb[0].mxu0
          %v938 = vpop.f32.mrb[0].mxu0
          %v939 = vadd.f32 %v851, %v938
          %v940 = vpop.f32.mrb[0].mxu0
          %941 = vdwg.mxu0
          %v942 = vld [vmem:[#allocation12] sm:$0xff]
          %v943 = vld [vmem:[#allocation12 + $0x8] sm:$0xff]
          %v944 = vlaneseq
          %v945 = vand.u32 %v944, 127
          %946 = vmax.xlane.f32.xlu0 %v942
          %v947 = vpop.xlane.xlu0 %946
          %948 = vmax.xlane.f32.xlu0 %v943
          %v949 = vpop.xlane.xlu0 %948
          %v950 = vsub.f32 %v942, %v947
          %v951 = vsub.f32 %v943, %v949
          %v952 = vmul.f32 %v950, 1.442695
          %v953 = vpow.pop %v952
          %v954 = vmul.f32 %v951, 1.442695
          %v955 = vpow.pop %v954
          %956 = vadd.xlane.f32.xlu0 %v953
          %v957 = vpop.xlane.xlu0 %956
          %958 = vadd.xlane.f32.xlu0 %v955
          %v959 = vpop.xlane.xlu0 %958
          %v960 = vrcp.pop %v957
          %v961 = vrcp.pop %v959
          %v962 = vmul.f32 %v953, %v960
          %v963 = vmul.f32 %v955, %v961
          %vm964 = vcmp.ge.f32.partialorder %v942, %v947
          %vm965 = vcmp.ge.f32.partialorder %v943, %v949
          %v966 = vsel %vm964, %v945, 128
          %v967 = vsel %vm965, %v945, 128
          %v968 = vand.u32 %v966, 65535
          %v969 = vshra.s32 %v966, 16
          %v970 = vcvt.s32.f32 %v968
          %v971 = vcvt.s32.f32 %v969
          %972 = vmin.xlane.f32.xlu0 %v971
          %v973 = vpop.xlane.xlu0 %972
          %vm974 = vcmp.eq.f32.partialorder %v971, %v973
          %v975 = vsel %vm974, %v970, inf
          %976 = vmin.xlane.f32.xlu0 %v975
          %v977 = vpop.xlane.xlu0 %976
          %v978 = vcvt.f32.s32 %v977
          %v979 = vcvt.f32.s32 %v973
          %v980 = vshll.u32 %v979, 16
          %v981 = vadd.s32 %v980, %v978
          %v982 = vand.u32 %v967, 65535
          %v983 = vshra.s32 %v967, 16
          %v984 = vcvt.s32.f32 %v982
          %v985 = vcvt.s32.f32 %v983
          %986 = vmin.xlane.f32.xlu0 %v985
          %v987 = vpop.xlane.xlu0 %986
          %vm988 = vcmp.eq.f32.partialorder %v985, %v987
          %v989 = vsel %vm988, %v984, inf
          %990 = vmin.xlane.f32.xlu0 %v989
          %v991 = vpop.xlane.xlu0 %990
          %v992 = vcvt.f32.s32 %v991
          %v993 = vcvt.f32.s32 %v987
          %v994 = vshll.u32 %v993, 16
          %v995 = vadd.s32 %v994, %v992
          %vm996 = vcmp.eq.s32.totalorder %v945, %v981
          %vm997 = vcmp.eq.s32.totalorder %v945, %v995
          %v998 = vsel %vm996, 1, 0
          %v999 = vsel %vm997, 1, 0
          %v1000 = vcvt.s32.f32 %v998
          %v1001 = vcvt.s32.f32 %v999
          %v1002 = vmul.f32 %v957, 0.5
          %v1003 = vmul.f32 %v959, 0.5
          %vm1004 = vcmp.lt.f32.partialorder %v1002, 1.0
          %vm1005 = vcmp.lt.f32.partialorder %v1003, 1.0
          %v1006 = vsel %vm1004, 1, 0
          %v1007 = vsel %vm1005, 1, 0
          %v1008 = vcvt.s32.f32 %v1006
          %v1009 = vcvt.s32.f32 %v1007
          %v1010 = vsub.f32 1.0, %v1008
          %v1011 = vsub.f32 1.0, %v1009
          %v1012 = vmul.f32 %v1008, 10.0
          %v1013 = vmul.f32 %v1009, 10.0
          %v1014 = vmul.f32 %v1012, %v1000
          %v1015 = vmul.f32 %v1013, %v1001
          %v1016 = vmul.f32 %v1010, %v962
          %v1017 = vmul.f32 %v1011, %v963
          %v1018 = vadd.f32 %v1014, %v1016
          %v1019 = vadd.f32 %v1015, %v1017
          %1020 = vmax.xlane.f32.xlu0 %v936
          %v1021 = vpop.xlane.xlu0 %1020
          %1022 = vmax.xlane.f32.xlu0 %v939
          %v1023 = vpop.xlane.xlu0 %1022
          %v1024 = vsub.f32 %v936, %v1021
          %v1025 = vsub.f32 %v939, %v1023
          %v1026 = vmul.f32 %v1024, 1.442695
          %v1027 = vpow.pop %v1026
          %v1028 = vmul.f32 %v1025, 1.442695
          %v1029 = vpow.pop %v1028
          %1030 = vadd.xlane.f32.xlu0 %v1027
          %v1031 = vpop.xlane.xlu0 %1030
          %1032 = vadd.xlane.f32.xlu0 %v1029
          %v1033 = vpop.xlane.xlu0 %1032
          %v1034 = vlog2.pop %v1031
          %v1035 = vmul.f32 %v1034, 0.6931472
          %v1036 = vlog2.pop %v1033
          %v1037 = vmul.f32 %v1036, 0.6931472
          %v1038 = vadd.f32 %v1035, %v1021
          %v1039 = vadd.f32 %v1037, %v1023
          %v1040 = vsub.f32 %v936, %v1038
          %v1041 = vsub.f32 %v939, %v1039
          %v1042 = vmul.f32 %v1018, %v1040
          %v1043 = vmul.f32 %v1019, %v1041
          %1044 = vadd.xlane.f32.xlu0 %v1042
          %v1045 = vpop.xlane.xlu0 %1044
          %1046 = vadd.xlane.f32.xlu0 %v1043
          %v1047 = vpop.xlane.xlu0 %1046
          %v1048 = vsub.f32 0.0, %v1045
          %v1049 = vsub.f32 0.0, %v1047
          %v1050 = vld [vmem:[#allocation14] sm:$0xff]
          %v1051 = vld [vmem:[#allocation14 + $0x8] sm:$0xff]
          %v1052 = vmul.f32 %v1048, %v1050
          %v1053 = vmul.f32 %v1049, %v1051
          %1055 = vset.pattern.permute.xlu0 0
          %1056 = vperm.xlu0 %1055, %v1052
          %v1057 = vpop.permute.xlu0 %1056
          %1060 = vset.pattern.permute.xlu0 0
          %1061 = vperm.xlu0 %1060, %v1053
          %v1062 = vpop.permute.xlu0 %1061
          %1064 = vst [vmem:[#allocation15] sm:$0xff] %v1057
          %1065 = vst [vmem:[#allocation15 + $0x8] sm:$0xff] %v1062
        $region84: #{tpu_custom_call.1} parent=47 // pred_fallthru
          _
        // Predicated region
        $region85: #{tpu_custom_call.1} parent=47 // pred_check
          %p1066 = pneg %p226
        $region86: #{tpu_custom_call.1} parent=47 // pred_check_branch
          %1068 = sbr.rel (%p1066) target = $region88
        $region87: #{tpu_custom_call.1} parent=47 // pred_region
          %s1069 = smul.u32 2, %s31
          %s1071 = ssub.s32 256, 256
          %1072 = vsyncadd [#allocation5], %s1071
          %s1073 = smul.addr %s1069, 128
          %s1074 = scalar_lea.hbm %s7, %s1073
          %s1075 = sshll.u32 [#allocation15], 4
          %s1076 = int_to_ptr.vmem [resolvable:$true] %s1075
          %1081 = dma.vmem_to_hbm [thread:$0]  %s1076, 256, %s1074, [#allocation5], 128, 128, 8
        $region88: #{tpu_custom_call.1} parent=47 // pred_fallthru
          _
        // Predicated region
        $region89: #{tpu_custom_call.1} parent=47 // pred_check
          %p1082 = pneg %p226
        $region90: #{tpu_custom_call.1} parent=47 // pred_check_branch
          %1084 = sbr.rel (%p1082) target = $region92
        $region91: #{tpu_custom_call.1} parent=47 // pred_region
          %1085 = dma.done [#allocation5], 256
        $region92: #{tpu_custom_call.1} parent=47 // pred_fallthru
          _
      $region48: #{tpu_custom_call.1} parent=5 // pred_fallthru
        _
      %p1086 = scmp.le.s32.totalorder 2, %s22
      // Predicated region
      $region93: #{tpu_custom_call.1} parent=5 // pred_check
        %p1087 = pneg %p1086
      $region94: #{tpu_custom_call.1} parent=5 // pred_check_branch
        %1089 = sbr.rel (%p1087) target = $region96
      $region95: #{tpu_custom_call.1} parent=5 // pred_region
        %s1090 = ssub.s32 %s22, 2
      $region96: #{tpu_custom_call.1} parent=5 // pred_fallthru
        _
    $region6: #{tpu_custom_call.1} parent=1 // loop_footer
      %s26 = sadd.s32 1, %s22
    $region7: #{tpu_custom_call.1} parent=1 // loop_footer_branch
      %21 = sbr.rel target = $region3
    $region8: #{tpu_custom_call.1} parent=1 // loop_exit
      _
    %1091 = vsyncpa [#allocation4], 1
    %s1092 = scalar_lea.sflag [#allocation4], 1
    %1093 = vsyncpa %s1092, 1
    %1094 = vsyncpa [#allocation7], 1
    %s1095 = scalar_lea.sflag [#allocation7], 1
    %1096 = vsyncpa %s1095, 1
    %1097 = vsyncpa [#allocation10], 1
    %1098 = vsyncpa [#allocation13], 1
    %1099 = vsyncpa [#allocation5], 1
    %s1100 = scalar_lea.sflag [#allocation5], 1
    %1101 = vsyncpa %s1100, 1

</llo_original>
